<compile_context>
chip_gen: v7x
topology: tpu7x:2x2x1
jax: 0.10.0
libtpu: 0.0.40
codegen_flags: <defaults>
</compile_context>

<pallas_src>
import functools
import math

import jax
import jax.numpy as jnp
from jax.experimental import pallas as pl
from jax.experimental.pallas import tpu as pltpu


def _spatial_dropout_kernel(x_ref, m_ref, o_ref, *, reps):
    """x_ref/o_ref: (TB, TN) tile of the (B, T*C) view; m_ref: (TB, C) noise.

    TN == reps * C and every tile starts on a channel boundary, so tiling the
    per-channel noise `reps` times along the lane axis reproduces the broadcast
    of the (B, 1, C) noise over timesteps.
    """
    noise = jnp.tile(m_ref[...], (1, reps))              # (TB, TN), {0, 1/(1-p)}
    o_ref[...] = x_ref[...] * noise


def _choose_block(B, N, C, itemsize, target_bytes):
    """Pick (TB, TN) block for the (B, N = T*C) view.

    Invariants: TN is either the full row or a multiple of lcm(C, 128);
    TB is either the full batch or a multiple of 8; TB*TN*itemsize ~ budget.
    """
    TB = B if B <= 8 else 8
    unit = math.lcm(C, 128)
    budget = max(1, target_bytes // (itemsize * TB))      # elements per row of block
    if N <= budget:
        TN = N
        rows = (budget // N) * TB                          # samples fitting the budget
        if rows >= B:
            TB = B
        elif rows >= 8:
            TB = (rows // 8) * 8
    else:
        TN = min(N, max(unit, (budget // unit) * unit))
    return TB, TN


def spatial_dropout(x, drop_prob, key, training=True, *, target_block_bytes=4 << 20):
    """Forward pass of Spatial_Dropout for a 3D (B, T, C) input."""
    if not training or drop_prob == 0.0:
        return x
    if drop_prob >= 1.0:
        return jnp.zeros_like(x)                           # noise.fill_(0) branch

    B, T, C = x.shape
    keep_prob = 1.0 - float(drop_prob)

    # One Bernoulli(keep) draw per (sample, channel), scaled by 1/(1-p) and cast
    # to the input dtype — same as noise.bernoulli_(1 - p).div_(1 - p) on a
    # (B, 1, C) tensor built with input.new().
    keep = jax.random.bernoulli(key, p=keep_prob, shape=(B, C))
    noise = (keep.astype(jnp.float32) * jnp.float32(1.0 / keep_prob)).astype(x.dtype)

    N = T * C
    itemsize = jnp.dtype(x.dtype).itemsize
    TB, TN = _choose_block(B, N, C, itemsize, target_block_bytes)
    reps = TN // C

    x2 = x.reshape(B, N)                                   # lane-dense view
    grid = (pl.cdiv(B, TB), pl.cdiv(N, TN))

    out2 = pl.pallas_call(
        functools.partial(_spatial_dropout_kernel, reps=reps),
        out_shape=jax.ShapeDtypeStruct((B, N), x.dtype),
        grid=grid,
        in_specs=[
            pl.BlockSpec((TB, TN), lambda i, j: (i, j)),   # x tile
            pl.BlockSpec((TB, C), lambda i, j: (i, 0)),    # per-(sample, channel) noise
        ],
        out_specs=pl.BlockSpec((TB, TN), lambda i, j: (i, j)),
        compiler_params=pltpu.CompilerParams(
            # Each block is independent (noise comes in as data): fully parallel
            # so v7x can shard the grid across both TensorCores.
            dimension_semantics=("parallel", "parallel"),
            # Double-buffered 4 MiB in + 4 MiB out blocks plus the tiled-noise
            # intermediate exceed v5e's 16 MiB scoped default; 48 MiB leaves
            # headroom everywhere (v7x per-TC VMEM is 64 MiB).
            vmem_limit_bytes=48 << 20,
        ),
    )(x2, noise)
    return out2.reshape(B, T, C)


if __name__ == "__main__":
    B, T, C = 2, 8, 32
    drop_prob = 0.3

    root = jax.random.PRNGKey(0)
    kx, kn = jax.random.split(root)
    x = jax.random.normal(kx, (B, T, C), dtype=jnp.float32)

    out = jax.block_until_ready(spatial_dropout(x, drop_prob, kn, training=True))

    # Reference: identical per-(sample, channel) Bernoulli mask, broadcast over T.
    keep = jax.random.bernoulli(kn, p=1.0 - drop_prob, shape=(B, C))
    ref = x * (keep.astype(jnp.float32) / (1.0 - drop_prob))[:, None, :]
    assert out.shape == x.shape and out.dtype == x.dtype
    assert bool(jnp.allclose(out, ref, atol=1e-6)), "kernel != reference spatial dropout"

    # Inference mode is a no-op; drop_prob == 1 zeroes everything.
    assert bool(jnp.array_equal(spatial_dropout(x, drop_prob, kn, training=False), x))
    assert bool(jnp.all(spatial_dropout(x, 1.0, kn, training=True) == 0.0))

    # Multi-block path (forces a grid > 1x1 and a partial last block).
    Bb, Tb, Cb = 10, 64, 96
    xb = jax.random.normal(kx, (Bb, Tb, Cb), dtype=jnp.float32)
    ob = jax.block_until_ready(
        spatial_dropout(xb, drop_prob, kn, training=True, target_block_bytes=1 << 14)
    )
    keep_b = jax.random.bernoulli(kn, p=1.0 - drop_prob, shape=(Bb, Cb))
    ref_b = xb * (keep_b.astype(jnp.float32) / (1.0 - drop_prob))[:, None, :]
    assert bool(jnp.allclose(ob, ref_b, atol=1e-6)), "multi-block kernel mismatch"

    print("KERNEL_OK")
</pallas_src>

<mosaic_0001>
module attributes {stable_mosaic.version = 11 : i64} {
  func.func @_spatial_dropout_kernel(%arg0: i32, %arg1: i32, %arg2: memref<2x256xf32, #tpu.memory_space<vmem>>, %arg3: memref<2x32xf32, #tpu.memory_space<vmem>>, %arg4: memref<2x256xf32, #tpu.memory_space<vmem>>) attributes {dimension_semantics = [#tpu.dimension_semantics<parallel>, #tpu.dimension_semantics<parallel>], iteration_bounds = array<i64: 1, 1>, scalar_prefetch = 0 : i64, scratch_operands = 0 : i64, tpu.core_type = #tpu.core_type<tc>, window_params = [{transform_indices = @transform_0, window_bounds = array<i64: 2, 256>}, {transform_indices = @transform_1, window_bounds = array<i64: 2, 32>}, {transform_indices = @transform_2, window_bounds = array<i64: 2, 256>}]} {
    %c0 = arith.constant 0 : index
    %c0_0 = arith.constant 0 : index
    %0 = vector.load %arg3[%c0, %c0_0] : memref<2x32xf32, #tpu.memory_space<vmem>>, vector<2x32xf32>
    %1 = tpu.concatenate %0, %0, %0, %0, %0, %0, %0, %0 in 1 : vector<2x32xf32>, vector<2x32xf32>, vector<2x32xf32>, vector<2x32xf32>, vector<2x32xf32>, vector<2x32xf32>, vector<2x32xf32>, vector<2x32xf32> -> vector<2x256xf32>
    %c0_1 = arith.constant 0 : index
    %c0_2 = arith.constant 0 : index
    %2 = vector.load %arg2[%c0_1, %c0_2] : memref<2x256xf32, #tpu.memory_space<vmem>>, vector<2x256xf32>
    %3 = arith.mulf %2, %1 : vector<2x256xf32>
    %c0_3 = arith.constant 0 : index
    %c0_4 = arith.constant 0 : index
    %4 = vector.load %arg4[%c0_3, %c0_4] : memref<2x256xf32, #tpu.memory_space<vmem>>, vector<2x256xf32>
    tpu.vector_store %arg4[%c0_3, %c0_4], %3 {strides = array<i32>} : memref<2x256xf32, #tpu.memory_space<vmem>>, vector<2x256xf32>,
    return
  }
  func.func @transform_0(%arg0: i32, %arg1: i32) -> (i32, i32) {
    %c0_i32 = arith.constant 0 : i32
    return %arg0, %arg1 : i32, i32
  }
  func.func @transform_1(%arg0: i32, %arg1: i32) -> (i32, i32) {
    %c0_i32 = arith.constant 0 : i32
    %c0_i32_0 = arith.constant 0 : i32
    return %arg0, %c0_i32 : i32, i32
  }
  func.func @transform_2(%arg0: i32, %arg1: i32) -> (i32, i32) {
    %c0_i32 = arith.constant 0 : i32
    return %arg0, %arg1 : i32, i32
  }
}

</mosaic_0001>

<llo_original>
// kernel: tpu_custom_call.1
$region0: #{tpu_custom_call.1}
  #allocation0 [shape = 'u32[]', space=smem, size = 0x4, offset = 0x4, fixed_abs, tag = 'smem constant byte address 0x4 - core index']
  #allocation1 [shape = 'u32[144,128]{1,0:T(1,128)}', space=vmem, size = 0x12000, scoped, tag = 'internal scratch']
  %s0 = inlined_call_operand.hbm [shape: f32[2,256], index: 0, kind: input, shape index: {}]
  %s1 = inlined_call_operand.vmem [shape: f32[2,32], index: 1, kind: input, shape index: {}]
  %s2 = inlined_call_operand.hbm [shape: f32[2,256], index: 2, kind: output, shape index: {}]
  %s3 = sld [smem:[#allocation0]]
  $region22: #{tpu_custom_call.1} parent=0
    _
  %s5 = ssub.s32 1, %s3
  %s6 = scalar_select 0, %s5, %s3
  $region1: #{tpu_custom_call.1} parent=0
    #allocation2 [shape = 'u8[2048]{0}', space=vmem, size = 0x800, scoped, tag = 'input window, operand 0, single buffered']
    #allocation3 [shape = 's32[1]{0}', space=sflag, size = 0x4, scoped, tag = 'scoped memory for tpu_custom_call.1']
    #allocation4 [shape = 's32[1]{0}', space=sflag, size = 0x4, scoped, tag = 'scoped memory for tpu_custom_call.1']
    #allocation5 [shape = 'u8[2048]{0}', space=vmem, size = 0x800, scoped, tag = 'output window, operand 0, single buffered']
    %7 = vsyncpa [#allocation3], 0
    %8 = vsyncpa [#allocation4], 0
    // Predicated region
    $region2: #{tpu_custom_call.1} parent=1 // pred_check
      _
    $region3: #{tpu_custom_call.1} parent=1 // pred_check_branch
      %10 = sbr.rel (0) target = $region5
    $region4: #{tpu_custom_call.1} parent=1 // pred_region
      %s12 = ssub.s32 64, 64
      %13 = vsyncadd [#allocation3], %s12
      %s15 = sshll.u32 [#allocation2], 4
      %s16 = int_to_ptr.vmem [resolvable:$true] %s15
      %18 = dma.hbm_to_vmem [thread:$0]  %s0, 64, %s16, [#allocation3]
    $region5: #{tpu_custom_call.1} parent=1 // pred_fallthru
      _
    // Predicated region
    $region6: #{tpu_custom_call.1} parent=1 // pred_check
      _
    $region7: #{tpu_custom_call.1} parent=1 // pred_check_branch
      %20 = sbr.rel (0) target = $region9
    $region8: #{tpu_custom_call.1} parent=1 // pred_region
      _
    $region9: #{tpu_custom_call.1} parent=1 // pred_fallthru
      _
    // Predicated region
    $region10: #{tpu_custom_call.1} parent=1 // pred_check
      _
    $region11: #{tpu_custom_call.1} parent=1 // pred_check_branch
      %22 = sbr.rel (0) target = $region13
    $region12: #{tpu_custom_call.1} parent=1 // pred_region
      %23 = dma.done [#allocation3], 64
    $region13: #{tpu_custom_call.1} parent=1 // pred_fallthru
      _
    %v24 = vld [vmem:[%s1] sm:$0x3]
    %26 = vrot.lane.b32.xlu0 %v24, 32
    %v27 = vpop.permute.xlu0 %26
    %29 = vrot.lane.b32.xlu0 %v24, 64
    %v30 = vpop.permute.xlu0 %29
    %32 = vrot.lane.b32.xlu0 %v24, 96
    %v33 = vpop.permute.xlu0 %32
    %vm35 = vcmask 261120
    %v36 = vsel %vm35, %v24, %v27
    %vm37 = vcmask 523264
    %v38 = vsel %vm37, %v36, %v30
    %vm39 = vcmask 785408
    %v40 = vsel %vm39, %v38, %v33
    %v41 = vld [vmem:[#allocation2] sm:$0xf]
    %v43 = vcombine.low %v40, %v40
    %v45 = vunpack.c.l.s4 1983009808
    %v46 = vunpack.c.0.s8 %v45
    %v47 = vlaneseq
    %v48 = vshrl.u32 %v47, 7
    %v49 = vsub.s32 %v46, %v48
    %v50 = vrot.slane %v43, %v49
    %v52 = vmul.f32 %v41, %v50
    %53 = vst [vmem:[#allocation5] sm:$0xf] %v52
    // Predicated region
    $region14: #{tpu_custom_call.1} parent=1 // pred_check
      _
    $region15: #{tpu_custom_call.1} parent=1 // pred_check_branch
      %55 = sbr.rel (0) target = $region17
    $region16: #{tpu_custom_call.1} parent=1 // pred_region
      %s57 = ssub.s32 64, 64
      %58 = vsyncadd [#allocation4], %s57
      %s60 = sshll.u32 [#allocation5], 4
      %s61 = int_to_ptr.vmem [resolvable:$true] %s60
      %63 = dma.vmem_to_hbm [thread:$0]  %s61, 64, %s2, [#allocation4]
    $region17: #{tpu_custom_call.1} parent=1 // pred_fallthru
      _
    // Predicated region
    $region18: #{tpu_custom_call.1} parent=1 // pred_check
      _
    $region19: #{tpu_custom_call.1} parent=1 // pred_check_branch
      %65 = sbr.rel (0) target = $region21
    $region20: #{tpu_custom_call.1} parent=1 // pred_region
      %66 = dma.done [#allocation4], 64
    $region21: #{tpu_custom_call.1} parent=1 // pred_fallthru
      _
    %67 = vsyncpa [#allocation3], 1
    %68 = vsyncpa [#allocation4], 1

</llo_original>
